<compile_context>
chip_gen: v6e
topology: v6e:2x2x1
jax: 0.10.0
libtpu: 0.0.40
codegen_flags: <defaults>
</compile_context>

<pallas_src>
import math
from functools import partial

import jax
import jax.numpy as jnp
from jax import lax
from jax.experimental import pallas as pl
from jax.experimental.pallas import tpu as pltpu

LANE = 128


def _round_up(x, m):
    return ((x + m - 1) // m) * m


def _pad2d(w, rows, cols):
    r, c = w.shape
    return jnp.pad(w, ((0, rows - r), (0, cols - c)))


def _block_diag(w, p):
    """Block-diagonal matrix with p copies of w (p == 1 -> identity)."""
    if p == 1:
        return w
    r, c = w.shape
    out = jnp.zeros((p * r, p * c), w.dtype)
    for i in range(p):
        out = out.at[i * r:(i + 1) * r, i * c:(i + 1) * c].set(w)
    return out


def rnn_classifier_kernel(x_ref, wih_ref, whh_ref, b_ref, wfc_ref, bfc_ref,
                          out_ref, h_ref, pre_ref, *, seq_len, unroll):
    """One (batch_tile, time_tile) grid cell of the tanh-RNN + fused FC head.

    x_ref  : (t_tile, b_p, P*E_pad)   matmul_dtype  time-major, P batch rows packed per row
    wih_ref: (P*E_pad, H_lane)        matmul_dtype  block-diagonal input projection
    whh_ref: (H_lane, H_lane)         matmul_dtype  block-diagonal recurrent weights
    b_ref  : (1, H_lane)              f32           b_ih + b_hh, packed
    wfc_ref: (H_lane, P*O_slot)       matmul_dtype  block-diagonal classifier weights
    bfc_ref: (1, P*O_slot)            f32
    out_ref: (b_p, P*O_slot)          f32           written only on the last time tile
    h_ref  : (b_p, H_lane)            f32 scratch   persistent hidden state
    pre_ref: (t_tile, b_p, H_lane)    f32 scratch   x @ W_ih + b for this time tile
    """
    t_idx = pl.program_id(1)
    t_tile, b_p, e2 = x_ref.shape
    h_lane = whh_ref.shape[1]

    @pl.when(t_idx == 0)
    def _init():
        h_ref[...] = jnp.zeros_like(h_ref)

    # ---- Input projection for the whole tile as ONE large MXU matmul (off the serial chain)
    x2d = x_ref[...].reshape(t_tile * b_p, e2)
    pre_ref[...] = (jnp.dot(x2d, wih_ref[...], preferred_element_type=jnp.float32)
                    + b_ref[...]).reshape(t_tile, b_p, h_lane)

    # Loop-invariant weight load, hoisted out of the recurrence.
    whh = whh_ref[...]
    mm_dtype = whh.dtype
    t_base = t_idx * t_tile
    need_mask = (seq_len % t_tile) != 0  # only the zero-padded tail of T needs masking

    # ---- Serial recurrence: moderate unroll, pre streamed from VMEM scratch ----
    # NOTE: tanh/add stay in f32 (v5e has no bf16 VPU/EUP); on v6e/v7x a bf16 activation
    # path would roughly halve the per-step VPU/EUP cycles.
    def step(t, h):
        h_new = jnp.tanh(pre_ref[t] + jnp.dot(h.astype(mm_dtype), whh,
                                              preferred_element_type=jnp.float32))
        if need_mask:
            # Padded time steps must not corrupt h (pre there is just the bias).
            h_new = jnp.where(t_base + t < seq_len, h_new, h)
        return h_new

    h = lax.fori_loop(0, t_tile, step, h_ref[...], unroll=unroll)
    h_ref[...] = h

    # ---- Last time tile: fused, lane-dense classifier head ----
    @pl.when(t_idx == pl.num_programs(1) - 1)
    def _finalize():
        out_ref[...] = (jnp.dot(h.astype(wfc_ref.dtype), wfc_ref[...],
                                preferred_element_type=jnp.float32)
                        + bfc_ref[...])


def init_params(key, vocab_size, embed_size=128, hidden_size=64, output_size=3):
    """Deterministic parameter init mirroring the PyTorch module's shapes/init."""
    ks = jax.random.split(key, 8)
    k = 1.0 / math.sqrt(hidden_size)
    return {
        # nn.Embedding: N(0, 1)
        "embedding": jax.random.normal(ks[0], (vocab_size, embed_size), jnp.float32),
        # nn.RNN: U(-1/sqrt(H), 1/sqrt(H)); stored pre-transposed as (in, out)
        "w_ih": jax.random.uniform(ks[1], (embed_size, hidden_size), jnp.float32, -k, k),
        "w_hh": jax.random.uniform(ks[2], (hidden_size, hidden_size), jnp.float32, -k, k),
        "b_ih": jax.random.uniform(ks[3], (hidden_size,), jnp.float32, -k, k),
        "b_hh": jax.random.uniform(ks[4], (hidden_size,), jnp.float32, -k, k),
        # nn.Linear(H, O): U(-1/sqrt(H), 1/sqrt(H)); stored pre-transposed (H, O)
        "w_fc": jax.random.uniform(ks[5], (hidden_size, output_size), jnp.float32, -k, k),
        "b_fc": jax.random.uniform(ks[6], (output_size,), jnp.float32, -k, k),
    }


def rnn_classifier_forward(tokens, params, *, matmul_dtype=jnp.bfloat16, max_t_tile=32):
    """tokens: (B, T) int32 -> logits (B, O) f32."""
    B, T = tokens.shape
    E = params["embedding"].shape[1]
    H = params["w_hh"].shape[0]
    O = params["w_fc"].shape[1]
    f32 = jnp.float32

    # ---- Packing: two batch rows per 128-lane row when the hidden/output fit in 64 lanes.
    P = 2 if (H <= LANE // 2 and O <= LANE // 2) else 1
    H_SLOT = LANE // P if P == 2 else _round_up(max(H, LANE), LANE)
    O_SLOT = LANE // P if P == 2 else _round_up(max(O, LANE), LANE)
    H_LANE = P * H_SLOT                      # 128 for this module
    E_PAD = _round_up(E, LANE)

    # ---- Tile sizes.  b_tile targets 256-wide MXUs for big batches and keeps n_b >= 2 for
    # medium batches so v7x's two TensorCores both get work; small batches pad to 16 sublanes.
    if B >= 512:
        b_tile = 256
    elif B >= 256:
        b_tile = 128
    else:
        b_tile = _round_up(B, 16)
    B_PAD = _round_up(B, b_tile)
    b_p_tile = b_tile // P                   # packed rows per tile (multiple of 8)

    t_tile = min(max_t_tile, _round_up(T, 8))
    T_PAD = _round_up(T, t_tile)
    n_b, n_t = B_PAD // b_tile, T_PAD // t_tile

    # ---- JAX glue: bf16 gather with the transpose folded in, zero padding, batch packing.
    # NOTE: zero-padded BATCH rows do NOT keep a zero hidden state (pre = bias there); they
    # are garbage by design and sliced off below — never reduce over the batch dim in-kernel.
    emb_table = params["embedding"].astype(matmul_dtype)
    x = jnp.take(emb_table, tokens.T, axis=0)                                  # (T, B, E)
    x = jnp.pad(x, ((0, T_PAD - T), (0, B_PAD - B), (0, E_PAD - E)))
    x = x.reshape(T_PAD, B_PAD // P, P * E_PAD)                                # pack pairs

    wih = _block_diag(_pad2d(params["w_ih"].astype(f32), E_PAD, H_SLOT), P).astype(matmul_dtype)
    whh = _block_diag(_pad2d(params["w_hh"].astype(f32), H_SLOT, H_SLOT), P).astype(matmul_dtype)
    b = jnp.tile(jnp.pad((params["b_ih"] + params["b_hh"]).astype(f32), (0, H_SLOT - H)),
                 (P,)).reshape(1, H_LANE)
    wfc = _block_diag(_pad2d(params["w_fc"].astype(f32), H_SLOT, O_SLOT), P).astype(matmul_dtype)
    bfc = jnp.tile(jnp.pad(params["b_fc"].astype(f32), (0, O_SLOT - O)), (P,)).reshape(1, P * O_SLOT)

    # ---- VMEM budget (double-buffered inputs/outputs + scratch), capped at v7x's 64 MiB.
    mm_b = jnp.dtype(matmul_dtype).itemsize
    est = (2 * t_tile * b_p_tile * P * E_PAD * mm_b                       # x double buffer
           + 2 * (wih.size + whh.size + wfc.size) * mm_b + 2 * (b.size + bfc.size) * 4
           + (b_p_tile * H_LANE + t_tile * b_p_tile * H_LANE) * 4         # h + pre scratch
           + 2 * b_p_tile * P * O_SLOT * 4)                               # out
    vmem_limit = int(min(64 * 2 ** 20, max(32 * 2 ** 20, 2 * est)))

    kernel = partial(rnn_classifier_kernel, seq_len=T, unroll=max(1, min(8, t_tile)))

    out_padded = pl.pallas_call(
        kernel,
        out_shape=jax.ShapeDtypeStruct((B_PAD // P, P * O_SLOT), jnp.float32),
        grid_spec=pltpu.PrefetchScalarGridSpec(
            num_scalar_prefetch=0,
            grid=(n_b, n_t),
            in_specs=[
                pl.BlockSpec((t_tile, b_p_tile, P * E_PAD), lambda bi, ti: (ti, bi, 0)),
                pl.BlockSpec((P * E_PAD, H_LANE), lambda bi, ti: (0, 0)),
                pl.BlockSpec((H_LANE, H_LANE), lambda bi, ti: (0, 0)),
                pl.BlockSpec((1, H_LANE), lambda bi, ti: (0, 0)),
                pl.BlockSpec((H_LANE, P * O_SLOT), lambda bi, ti: (0, 0)),
                pl.BlockSpec((1, P * O_SLOT), lambda bi, ti: (0, 0)),
            ],
            out_specs=pl.BlockSpec((b_p_tile, P * O_SLOT), lambda bi, ti: (bi, 0)),
            scratch_shapes=[
                pltpu.VMEM((b_p_tile, H_LANE), jnp.float32),           # h
                pltpu.VMEM((t_tile, b_p_tile, H_LANE), jnp.float32),   # pre
            ],
        ),
        compiler_params=pltpu.CompilerParams(
            dimension_semantics=("parallel", "arbitrary"),
            vmem_limit_bytes=vmem_limit,
        ),
    )(x, wih, whh, b, wfc, bfc)

    # Unpack: (B_PAD/P, P*O_SLOT) -> (B_PAD, O_SLOT) -> slice real batch / classes.
    return out_padded.reshape(B_PAD, O_SLOT)[:B, :O]


def rnn_classifier_ref(tokens, params):
    """Pure-JAX reference identical to the PyTorch forward."""
    emb = jnp.take(params["embedding"], tokens, axis=0)  # (B, T, E)
    B = emb.shape[0]
    H = params["w_hh"].shape[0]
    b = params["b_ih"] + params["b_hh"]

    def step(h, x_t):
        return jnp.tanh(x_t @ params["w_ih"] + h @ params["w_hh"] + b), None

    h0 = jnp.zeros((B, H), jnp.float32)
    h_final, _ = lax.scan(step, h0, jnp.transpose(emb, (1, 0, 2)))
    return h_final @ params["w_fc"] + params["b_fc"]


if __name__ == "__main__":
    # Small synthetic vocab stands in for the BERT tokenizer's vocab.
    # TODO(synk): real module uses BertTokenizer.vocab_size (30522); synthetic vocab used here.
    VOCAB, EMBED, HIDDEN, OUT = 1000, 128, 64, 3
    BATCH, SEQ = 2, 8

    key = jax.random.PRNGKey(0)
    k_params, k_tokens = jax.random.split(key)
    params = init_params(k_params, VOCAB, EMBED, HIDDEN, OUT)
    tokens = jax.random.randint(k_tokens, (BATCH, SEQ), 0, VOCAB, dtype=jnp.int32)

    ref = jax.block_until_ready(rnn_classifier_ref(tokens, params))

    # f32 MXU path, multi time tile (exercises persistent-h init/finalize), tight tolerance.
    logits_f32 = jax.block_until_ready(
        rnn_classifier_forward(tokens, params, matmul_dtype=jnp.float32, max_t_tile=4))
    assert logits_f32.shape == (BATCH, OUT)
    assert jnp.allclose(logits_f32, ref, rtol=1e-3, atol=1e-3), "f32 kernel mismatch"

    # f32 path with t_tile that does NOT divide T (exercises padded-time masking).
    logits_mask = jax.block_until_ready(
        rnn_classifier_forward(tokens, params, matmul_dtype=jnp.float32, max_t_tile=5))
    assert jnp.allclose(logits_mask, ref, rtol=1e-3, atol=1e-3), "time-mask kernel mismatch"

    # Default path: bf16 MXU operands, large time tile.  bf16 hidden-state error compounds
    # over T; re-validate tolerance at production sequence lengths before relying on it.
    logits_bf16 = jax.block_until_ready(rnn_classifier_forward(tokens, params))
    assert logits_bf16.shape == (BATCH, OUT)
    assert jnp.allclose(logits_bf16, ref, rtol=5e-2, atol=5e-2), "bf16 kernel mismatch"

    print("KERNEL_OK")
</pallas_src>

<mosaic_0001>
module attributes {stable_mosaic.version = 11 : i64} {
  func.func @rnn_classifier_kernel(%arg0: i32, %arg1: i32, %arg2: memref<4x8x256xf32, #tpu.memory_space<vmem>>, %arg3: memref<256x128xf32, #tpu.memory_space<vmem>>, %arg4: memref<128x128xf32, #tpu.memory_space<vmem>>, %arg5: memref<1x128xf32, #tpu.memory_space<vmem>>, %arg6: memref<128x128xf32, #tpu.memory_space<vmem>>, %arg7: memref<1x128xf32, #tpu.memory_space<vmem>>, %arg8: memref<8x128xf32, #tpu.memory_space<vmem>>, %arg9: memref<8x128xf32, #tpu.memory_space<vmem>>, %arg10: memref<4x8x128xf32, #tpu.memory_space<vmem>>) attributes {dimension_semantics = [#tpu.dimension_semantics<parallel>, #tpu.dimension_semantics<arbitrary>], iteration_bounds = array<i64: 1, 2>, scalar_prefetch = 0 : i64, scratch_operands = 2 : i64, tpu.core_type = #tpu.core_type<tc>, window_params = [{transform_indices = @transform_0, window_bounds = array<i64: 4, 8, 256>}, {pipeline_mode = #tpu.pipeline_mode<synchronous>, transform_indices = @transform_1, window_bounds = array<i64: 256, 128>}, {pipeline_mode = #tpu.pipeline_mode<synchronous>, transform_indices = @transform_2, window_bounds = array<i64: 128, 128>}, {pipeline_mode = #tpu.pipeline_mode<synchronous>, transform_indices = @transform_3, window_bounds = array<i64: 1, 128>}, {pipeline_mode = #tpu.pipeline_mode<synchronous>, transform_indices = @transform_4, window_bounds = array<i64: 128, 128>}, {pipeline_mode = #tpu.pipeline_mode<synchronous>, transform_indices = @transform_5, window_bounds = array<i64: 1, 128>}, {transform_indices = @transform_6, window_bounds = array<i64: 8, 128>}]} {
    %c0_i32 = arith.constant 0 : i32
    %0 = arith.cmpi eq, %arg1, %c0_i32 : i32
    %1 = arith.extui %0 : i1 to i32
    %c0_i32_0 = arith.constant 0 : i32
    %2 = arith.cmpi ne, %1, %c0_i32_0 : i32
    scf.if %2 {
      %cst_31 = arith.constant 0.000000e+00 : f32
      %42 = vector.broadcast %cst_31 : f32 to vector<8x128xf32>
      %c0_32 = arith.constant 0 : index
      %c0_33 = arith.constant 0 : index
      %43 = vector.load %arg9[%c0_32, %c0_33] : memref<8x128xf32, #tpu.memory_space<vmem>>, vector<8x128xf32>
      tpu.vector_store %arg9[%c0_32, %c0_33], %42 {strides = array<i32>} : memref<8x128xf32, #tpu.memory_space<vmem>>, vector<8x128xf32>,
    } else {
    }
    %c0 = arith.constant 0 : index
    %c0_1 = arith.constant 0 : index
    %c0_2 = arith.constant 0 : index
    %3 = vector.load %arg2[%c0, %c0_1, %c0_2] : memref<4x8x256xf32, #tpu.memory_space<vmem>>, vector<4x8x256xf32>
    %4 = vector.shape_cast %3 : vector<4x8x256xf32> to vector<32x256xf32>
    %c0_3 = arith.constant 0 : index
    %c0_4 = arith.constant 0 : index
    %5 = vector.load %arg3[%c0_3, %c0_4] : memref<256x128xf32, #tpu.memory_space<vmem>>, vector<256x128xf32>
    %cst = arith.constant dense<0.000000e+00> : vector<32x128xf32>
    %6 = tpu.matmul %4, %5, %cst {dimension_numbers = #tpu.dot_dimension_numbers<[1], [0], [0], [1], [0, 0, 1, 1], [], []>} : vector<32x256xf32>, vector<256x128xf32>, vector<32x128xf32> -> vector<32x128xf32>
    %c0_5 = arith.constant 0 : index
    %c0_6 = arith.constant 0 : index
    %7 = vector.load %arg5[%c0_5, %c0_6] : memref<1x128xf32, #tpu.memory_space<vmem>>, vector<1x128xf32>
    %8 = vector.broadcast %7 : vector<1x128xf32> to vector<32x128xf32>
    %9 = arith.addf %6, %8 : vector<32x128xf32>
    %10 = vector.shape_cast %9 : vector<32x128xf32> to vector<4x8x128xf32>
    %c0_7 = arith.constant 0 : index
    %c0_8 = arith.constant 0 : index
    %c0_9 = arith.constant 0 : index
    %11 = vector.load %arg10[%c0_7, %c0_8, %c0_9] : memref<4x8x128xf32, #tpu.memory_space<vmem>>, vector<4x8x128xf32>
    tpu.vector_store %arg10[%c0_7, %c0_8, %c0_9], %10 {strides = array<i32>} : memref<4x8x128xf32, #tpu.memory_space<vmem>>, vector<4x8x128xf32>,
    %c0_10 = arith.constant 0 : index
    %c0_11 = arith.constant 0 : index
    %12 = vector.load %arg4[%c0_10, %c0_11] : memref<128x128xf32, #tpu.memory_space<vmem>>, vector<128x128xf32>
    %c0_12 = arith.constant 0 : index
    %c0_13 = arith.constant 0 : index
    %13 = vector.load %arg9[%c0_12, %c0_13] : memref<8x128xf32, #tpu.memory_space<vmem>>, vector<8x128xf32>
    %c0_i32_14 = arith.constant 0 : i32
    %14 = arith.index_cast %c0_i32_14 : i32 to index
    %c0_15 = arith.constant 0 : index
    %c0_16 = arith.constant 0 : index
    %15 = vector.load %arg10[%14, %c0_15, %c0_16] : memref<4x8x128xf32, #tpu.memory_space<vmem>>, vector<1x8x128xf32>
    %16 = vector.shape_cast %15 : vector<1x8x128xf32> to vector<8x128xf32>
    %cst_17 = arith.constant dense<0.000000e+00> : vector<8x128xf32>
    %17 = tpu.matmul %13, %12, %cst_17 {dimension_numbers = #tpu.dot_dimension_numbers<[1], [0], [0], [1], [0, 0, 1, 1], [], []>} : vector<8x128xf32>, vector<128x128xf32>, vector<8x128xf32> -> vector<8x128xf32>
    %18 = arith.addf %16, %17 : vector<8x128xf32>
    %19 = math.tanh %18 : vector<8x128xf32>
    %c1_i32 = arith.constant 1 : i32
    %20 = arith.index_cast %c1_i32 : i32 to index
    %c0_18 = arith.constant 0 : index
    %c0_19 = arith.constant 0 : index
    %21 = vector.load %arg10[%20, %c0_18, %c0_19] : memref<4x8x128xf32, #tpu.memory_space<vmem>>, vector<1x8x128xf32>
    %22 = vector.shape_cast %21 : vector<1x8x128xf32> to vector<8x128xf32>
    %cst_20 = arith.constant dense<0.000000e+00> : vector<8x128xf32>
    %23 = tpu.matmul %19, %12, %cst_20 {dimension_numbers = #tpu.dot_dimension_numbers<[1], [0], [0], [1], [0, 0, 1, 1], [], []>} : vector<8x128xf32>, vector<128x128xf32>, vector<8x128xf32> -> vector<8x128xf32>
    %24 = arith.addf %22, %23 : vector<8x128xf32>
    %25 = math.tanh %24 : vector<8x128xf32>
    %c2_i32 = arith.constant 2 : i32
    %26 = arith.index_cast %c2_i32 : i32 to index
    %c0_21 = arith.constant 0 : index
    %c0_22 = arith.constant 0 : index
    %27 = vector.load %arg10[%26, %c0_21, %c0_22] : memref<4x8x128xf32, #tpu.memory_space<vmem>>, vector<1x8x128xf32>
    %28 = vector.shape_cast %27 : vector<1x8x128xf32> to vector<8x128xf32>
    %cst_23 = arith.constant dense<0.000000e+00> : vector<8x128xf32>
    %29 = tpu.matmul %25, %12, %cst_23 {dimension_numbers = #tpu.dot_dimension_numbers<[1], [0], [0], [1], [0, 0, 1, 1], [], []>} : vector<8x128xf32>, vector<128x128xf32>, vector<8x128xf32> -> vector<8x128xf32>
    %30 = arith.addf %28, %29 : vector<8x128xf32>
    %31 = math.tanh %30 : vector<8x128xf32>
    %c3_i32 = arith.constant 3 : i32
    %32 = arith.index_cast %c3_i32 : i32 to index
    %c0_24 = arith.constant 0 : index
    %c0_25 = arith.constant 0 : index
    %33 = vector.load %arg10[%32, %c0_24, %c0_25] : memref<4x8x128xf32, #tpu.memory_space<vmem>>, vector<1x8x128xf32>
    %34 = vector.shape_cast %33 : vector<1x8x128xf32> to vector<8x128xf32>
    %cst_26 = arith.constant dense<0.000000e+00> : vector<8x128xf32>
    %35 = tpu.matmul %31, %12, %cst_26 {dimension_numbers = #tpu.dot_dimension_numbers<[1], [0], [0], [1], [0, 0, 1, 1], [], []>} : vector<8x128xf32>, vector<128x128xf32>, vector<8x128xf32> -> vector<8x128xf32>
    %36 = arith.addf %34, %35 : vector<8x128xf32>
    %37 = math.tanh %36 : vector<8x128xf32>
    %c4_i32 = arith.constant 4 : i32
    %c0_27 = arith.constant 0 : index
    %c0_28 = arith.constant 0 : index
    %38 = vector.load %arg9[%c0_27, %c0_28] : memref<8x128xf32, #tpu.memory_space<vmem>>, vector<8x128xf32>
    tpu.vector_store %arg9[%c0_27, %c0_28], %37 {strides = array<i32>} : memref<8x128xf32, #tpu.memory_space<vmem>>, vector<8x128xf32>,
    %c1_i32_29 = arith.constant 1 : i32
    %39 = arith.cmpi eq, %arg1, %c1_i32_29 : i32
    %40 = arith.extui %39 : i1 to i32
    %c0_i32_30 = arith.constant 0 : i32
    %41 = arith.cmpi ne, %40, %c0_i32_30 : i32
    scf.if %41 {
      %c0_31 = arith.constant 0 : index
      %c0_32 = arith.constant 0 : index
      %42 = vector.load %arg6[%c0_31, %c0_32] : memref<128x128xf32, #tpu.memory_space<vmem>>, vector<128x128xf32>
      %cst_33 = arith.constant dense<0.000000e+00> : vector<8x128xf32>
      %43 = tpu.matmul %37, %42, %cst_33 {dimension_numbers = #tpu.dot_dimension_numbers<[1], [0], [0], [1], [0, 0, 1, 1], [], []>} : vector<8x128xf32>, vector<128x128xf32>, vector<8x128xf32> -> vector<8x128xf32>
      %c0_34 = arith.constant 0 : index
      %c0_35 = arith.constant 0 : index
      %44 = vector.load %arg7[%c0_34, %c0_35] : memref<1x128xf32, #tpu.memory_space<vmem>>, vector<1x128xf32>
      %45 = vector.broadcast %44 : vector<1x128xf32> to vector<8x128xf32>
      %46 = arith.addf %43, %45 : vector<8x128xf32>
      %c0_36 = arith.constant 0 : index
      %c0_37 = arith.constant 0 : index
      %47 = vector.load %arg8[%c0_36, %c0_37] : memref<8x128xf32, #tpu.memory_space<vmem>>, vector<8x128xf32>
      tpu.vector_store %arg8[%c0_36, %c0_37], %46 {strides = array<i32>} : memref<8x128xf32, #tpu.memory_space<vmem>>, vector<8x128xf32>,
    } else {
    }
    return
  }
  func.func @transform_0(%arg0: i32, %arg1: i32) -> (i32, i32, i32) {
    %c0_i32 = arith.constant 0 : i32
    %c0_i32_0 = arith.constant 0 : i32
    return %arg1, %arg0, %c0_i32 : i32, i32, i32
  }
  func.func @transform_1(%arg0: i32, %arg1: i32) -> (i32, i32) {
    %c0_i32 = arith.constant 0 : i32
    %c0_i32_0 = arith.constant 0 : i32
    %c0_i32_1 = arith.constant 0 : i32
    return %c0_i32, %c0_i32_0 : i32, i32
  }
  func.func @transform_2(%arg0: i32, %arg1: i32) -> (i32, i32) {
    %c0_i32 = arith.constant 0 : i32
    %c0_i32_0 = arith.constant 0 : i32
    %c0_i32_1 = arith.constant 0 : i32
    return %c0_i32, %c0_i32_0 : i32, i32
  }
  func.func @transform_3(%arg0: i32, %arg1: i32) -> (i32, i32) {
    %c0_i32 = arith.constant 0 : i32
    %c0_i32_0 = arith.constant 0 : i32
    %c0_i32_1 = arith.constant 0 : i32
    return %c0_i32, %c0_i32_0 : i32, i32
  }
  func.func @transform_4(%arg0: i32, %arg1: i32) -> (i32, i32) {
    %c0_i32 = arith.constant 0 : i32
    %c0_i32_0 = arith.constant 0 : i32
    %c0_i32_1 = arith.constant 0 : i32
    return %c0_i32, %c0_i32_0 : i32, i32
  }
  func.func @transform_5(%arg0: i32, %arg1: i32) -> (i32, i32) {
    %c0_i32 = arith.constant 0 : i32
    %c0_i32_0 = arith.constant 0 : i32
    %c0_i32_1 = arith.constant 0 : i32
    return %c0_i32, %c0_i32_0 : i32, i32
  }
  func.func @transform_6(%arg0: i32, %arg1: i32) -> (i32, i32) {
    %c0_i32 = arith.constant 0 : i32
    %c0_i32_0 = arith.constant 0 : i32
    return %arg0, %c0_i32 : i32, i32
  }
}

</mosaic_0001>

<llo_original>
// kernel: tpu_custom_call.1
$region0: #{tpu_custom_call.1}
  #allocation0 [shape = 'u32[]', space=smem, size = 0x4, offset = 0x4, fixed_abs, tag = 'smem constant byte address 0x4 - core index']
  #allocation1 [shape = 'u32[144,128]{1,0:T(1,128)}', space=vmem, size = 0x12000, scoped, tag = 'internal scratch']
  #allocation2 [shape = 'f32[8,128]{1,0:T(8,128)}', space=vmem, size = 0x1000, scoped, tag = 'scratch operand']
  #allocation3 [shape = 'f32[4,8,128]{2,1,0:T(8,128)}', space=vmem, size = 0x4000, scoped, tag = 'scratch operand']
  %s0 = inlined_call_operand.hbm [shape: f32[8,8,256], index: 0, kind: input, shape index: {}]
  %s1 = inlined_call_operand.hbm [shape: f32[256,128], index: 1, kind: input, shape index: {}]
  %s2 = inlined_call_operand.hbm [shape: f32[128,128], index: 2, kind: input, shape index: {}]
  %s3 = inlined_call_operand.vmem [shape: f32[1,128], index: 3, kind: input, shape index: {}]
  %s4 = inlined_call_operand.hbm [shape: f32[128,128], index: 4, kind: input, shape index: {}]
  %s5 = inlined_call_operand.vmem [shape: f32[1,128], index: 5, kind: input, shape index: {}]
  %s6 = inlined_call_operand.hbm [shape: f32[8,128], index: 6, kind: output, shape index: {}]
  %s7 = sld [smem:[#allocation0]]
  $region81: #{tpu_custom_call.1} parent=0
    _
  %s9 = ssub.s32 1, %s7
  %s10 = scalar_select 0, %s9, %s7
  $region1: #{tpu_custom_call.1} parent=0
    #allocation4 [shape = 'u8[65536]{0}', space=vmem, size = 0x10000, scoped, tag = 'input window, operand 0']
    #allocation5 [shape = 's32[2]{0}', space=sflag, size = 0x8, scoped, tag = 'scoped memory for tpu_custom_call.1']
    #allocation6 [shape = 's32[2]{0}', space=sflag, size = 0x8, scoped, tag = 'scoped memory for tpu_custom_call.1']
    #allocation7 [shape = 'u8[131072]{0}', space=vmem, size = 0x20000, scoped, tag = 'input window, operand 1, single buffered']
    #allocation8 [shape = 's32[1]{0}', space=sflag, size = 0x4, scoped, tag = 'scoped memory for tpu_custom_call.1']
    #allocation9 [shape = 'u8[65536]{0}', space=vmem, size = 0x10000, scoped, tag = 'input window, operand 2, single buffered']
    #allocation10 [shape = 'u8[65536]{0}', space=vmem, size = 0x10000, scoped, tag = 'input window, operand 4, single buffered']
    #allocation11 [shape = 's32[1]{0}', space=sflag, size = 0x4, scoped, tag = 'scoped memory for tpu_custom_call.1']
    #allocation12 [shape = 'u8[4096]{0}', space=vmem, size = 0x1000, scoped, tag = 'output window, operand 0, single buffered']
    %11 = vsyncpa [#allocation5], 0
    %s12 = scalar_lea.sflag [#allocation5], 1
    %13 = vsyncpa %s12, 0
    %14 = vsyncpa [#allocation8], 0
    %15 = vsyncpa [#allocation11], 0
    %16 = vsyncpa [#allocation6], 0
    loop: start=0, step=1, limit=4
    $region2: #{tpu_custom_call.1} parent=1 // loop_pre_header
      _
    $region3: #{tpu_custom_call.1} parent=1 // loop_header
      %s18 = sphi 0, %s22
      %p19 = scmp.ge.s32.totalorder %s18, 4
      %s25 = sphi 0, %s37
      %s26 = sphi 0, %s33
      %s27 = sphi 0, %s25
      %s28 = sphi 0, %s26
      %s29 = sphi 0, %s27
      %s30 = sphi 0, %s28
      %s42 = sphi 0, %s44
      %s45 = sphi 0, %s42
      %s46 = sphi 0, %s45
      %s62 = sphi 0, %s46
      %s66 = sphi 0, %s66
      %s68 = sphi 0, %s66
      %s69 = sphi 0, %s68
      %s83 = sphi 0, %s69
      %s87 = sphi 0, %s87
      %s89 = sphi 0, %s87
      %s90 = sphi 0, %s89
      %s104 = sphi 0, %s90
      %s108 = sphi 0, %s108
      %s110 = sphi 0, %s108
      %s111 = sphi 0, %s110
      %s125 = sphi 0, %s111
      %s129 = sphi 0, %s129
      %s131 = sphi 0, %s129
      %s132 = sphi 0, %s131
      %s146 = sphi 0, %s132
      %s150 = sphi 0, %s150
      %s152 = sphi 0, %s150
      %s153 = sphi 0, %s152
      %s167 = sphi 0, %s153
      %s173 = sphi 0, %s175
      %s176 = sphi 0, %s173
      %s177 = sphi 0, %s176
      %s193 = sphi 0, %s177
    $region4: #{tpu_custom_call.1} parent=1 // loop_header_branch
      %21 = sbr.rel (%p19) target = $region8
    $region5: #{tpu_custom_call.1} parent=1 // loop_body
      %s23 = ssub.s32 %s18, 1
      %s24 = ssub.s32 %s18, 2
      %s31 = sadd.s32 1, %s26
      %p32 = scmp.ge.s32.totalorder %s31, 2
      %s33 = scalar_select %p32, 0, %s31
      %s34 = sadd.s32 1, %s25
      %s35 = scalar_select %p32, %s34, %s25
      %p36 = scmp.ge.s32.totalorder %s35, 1
      %s37 = scalar_select %p36, 0, %s35
      %s38 = ssub.s32 %s26, %s33
      %s39 = ssub.s32 %s25, %s37
      %s40 = sor.u32 %s38, %s39
      %p41 = scmp.eq.s32.totalorder %s40, 0
      %s43 = sadd.s32 %s42, 1
      %s44 = scalar_select %p41, %s42, %s43
      %p47 = pneg %p41
      %p48 = scmp.eq.s32.totalorder %s18, 1
      %p49 = por %p47, %p48
      %p50 = scmp.ne.s32.totalorder %s42, %s45
      %p51 = scmp.eq.s32.totalorder %s18, 0
      %p52 = por %p50, %p51
      %p53 = scmp.ne.s32.totalorder %s42, %s45
      %p54 = scmp.eq.s32.totalorder %s23, 1
      %p55 = por %p53, %p54
      %p56 = scmp.ne.s32.totalorder %s45, %s46
      %p57 = scmp.eq.s32.totalorder %s23, 0
      %p58 = por %p56, %p57
      %p59 = scmp.ne.s32.totalorder %s45, %s46
      %p60 = scmp.eq.s32.totalorder %s24, 1
      %p61 = por %p59, %p60
      %p63 = scmp.ne.s32.totalorder %s46, %s62
      %p64 = scmp.eq.s32.totalorder %s24, 0
      %p65 = por %p63, %p64
      %s67 = sadd.s32 %s66, 1
      %p70 = scmp.eq.s32.totalorder %s18, 1
      %p71 = scmp.ne.s32.totalorder %s66, %s68
      %p72 = scmp.eq.s32.totalorder %s18, 0
      %p73 = por %p71, %p72
      %p74 = scmp.ne.s32.totalorder %s66, %s68
      %p75 = scmp.eq.s32.totalorder %s23, 1
      %p76 = por %p74, %p75
      %p77 = scmp.ne.s32.totalorder %s68, %s69
      %p78 = scmp.eq.s32.totalorder %s23, 0
      %p79 = por %p77, %p78
      %p80 = scmp.ne.s32.totalorder %s68, %s69
      %p81 = scmp.eq.s32.totalorder %s24, 1
      %p82 = por %p80, %p81
      %p84 = scmp.ne.s32.totalorder %s69, %s83
      %p85 = scmp.eq.s32.totalorder %s24, 0
      %p86 = por %p84, %p85
      %s88 = sadd.s32 %s87, 1
      %p91 = scmp.eq.s32.totalorder %s18, 1
      %p92 = scmp.ne.s32.totalorder %s87, %s89
      %p93 = scmp.eq.s32.totalorder %s18, 0
      %p94 = por %p92, %p93
      %p95 = scmp.ne.s32.totalorder %s87, %s89
      %p96 = scmp.eq.s32.totalorder %s23, 1
      %p97 = por %p95, %p96
      %p98 = scmp.ne.s32.totalorder %s89, %s90
      %p99 = scmp.eq.s32.totalorder %s23, 0
      %p100 = por %p98, %p99
      %p101 = scmp.ne.s32.totalorder %s89, %s90
      %p102 = scmp.eq.s32.totalorder %s24, 1
      %p103 = por %p101, %p102
      %p105 = scmp.ne.s32.totalorder %s90, %s104
      %p106 = scmp.eq.s32.totalorder %s24, 0
      %p107 = por %p105, %p106
      %s109 = sadd.s32 %s108, 1
      %p112 = scmp.eq.s32.totalorder %s18, 1
      %p113 = scmp.ne.s32.totalorder %s108, %s110
      %p114 = scmp.eq.s32.totalorder %s18, 0
      %p115 = por %p113, %p114
      %p116 = scmp.ne.s32.totalorder %s108, %s110
      %p117 = scmp.eq.s32.totalorder %s23, 1
      %p118 = por %p116, %p117
      %p119 = scmp.ne.s32.totalorder %s110, %s111
      %p120 = scmp.eq.s32.totalorder %s23, 0
      %p121 = por %p119, %p120
      %p122 = scmp.ne.s32.totalorder %s110, %s111
      %p123 = scmp.eq.s32.totalorder %s24, 1
      %p124 = por %p122, %p123
      %p126 = scmp.ne.s32.totalorder %s111, %s125
      %p127 = scmp.eq.s32.totalorder %s24, 0
      %p128 = por %p126, %p127
      %s130 = sadd.s32 %s129, 1
      %p133 = scmp.eq.s32.totalorder %s18, 1
      %p134 = scmp.ne.s32.totalorder %s129, %s131
      %p135 = scmp.eq.s32.totalorder %s18, 0
      %p136 = por %p134, %p135
      %p137 = scmp.ne.s32.totalorder %s129, %s131
      %p138 = scmp.eq.s32.totalorder %s23, 1
      %p139 = por %p137, %p138
      %p140 = scmp.ne.s32.totalorder %s131, %s132
      %p141 = scmp.eq.s32.totalorder %s23, 0
      %p142 = por %p140, %p141
      %p143 = scmp.ne.s32.totalorder %s131, %s132
      %p144 = scmp.eq.s32.totalorder %s24, 1
      %p145 = por %p143, %p144
      %p147 = scmp.ne.s32.totalorder %s132, %s146
      %p148 = scmp.eq.s32.totalorder %s24, 0
      %p149 = por %p147, %p148
      %s151 = sadd.s32 %s150, 1
      %p154 = scmp.eq.s32.totalorder %s18, 1
      %p155 = scmp.ne.s32.totalorder %s150, %s152
      %p156 = scmp.eq.s32.totalorder %s18, 0
      %p157 = por %p155, %p156
      %p158 = scmp.ne.s32.totalorder %s150, %s152
      %p159 = scmp.eq.s32.totalorder %s23, 1
      %p160 = por %p158, %p159
      %p161 = scmp.ne.s32.totalorder %s152, %s153
      %p162 = scmp.eq.s32.totalorder %s23, 0
      %p163 = por %p161, %p162
      %p164 = scmp.ne.s32.totalorder %s152, %s153
      %p165 = scmp.eq.s32.totalorder %s24, 1
      %p166 = por %p164, %p165
      %p168 = scmp.ne.s32.totalorder %s153, %s167
      %p169 = scmp.eq.s32.totalorder %s24, 0
      %p170 = por %p168, %p169
      %s171 = ssub.s32 %s25, %s37
      %p172 = scmp.eq.s32.totalorder %s171, 0
      %s174 = sadd.s32 %s173, 1
      %s175 = scalar_select %p172, %s173, %s174
      %p178 = pneg %p172
      %p179 = scmp.eq.s32.totalorder %s18, 1
      %p180 = por %p178, %p179
      %p181 = scmp.ne.s32.totalorder %s173, %s176
      %p182 = scmp.eq.s32.totalorder %s18, 0
      %p183 = por %p181, %p182
      %p184 = scmp.ne.s32.totalorder %s173, %s176
      %p185 = scmp.eq.s32.totalorder %s23, 1
      %p186 = por %p184, %p185
      %p187 = scmp.ne.s32.totalorder %s176, %s177
      %p188 = scmp.eq.s32.totalorder %s23, 0
      %p189 = por %p187, %p188
      %p190 = scmp.ne.s32.totalorder %s176, %s177
      %p191 = scmp.eq.s32.totalorder %s24, 1
      %p192 = por %p190, %p191
      %p194 = scmp.ne.s32.totalorder %s177, %s193
      %p195 = scmp.eq.s32.totalorder %s24, 0
      %p196 = por %p194, %p195
      %p197 = scmp.le.s32.totalorder 1, %s18
      %p198 = scmp.lt.s32.totalorder %s18, 3
      %p199 = pnand %p197, %p198
      %p200 = pneg %p199
      // Predicated region
      $region9: #{tpu_custom_call.1} parent=5 // pred_check
        _
      $region10: #{tpu_custom_call.1} parent=5 // pred_check_branch
        %202 = sbr.rel (%p199) target = $region12
      $region11: #{tpu_custom_call.1} parent=5 // pred_region
        %s203 = ssub.s32 %s18, 1
        // Predicated region
        $region13: #{tpu_custom_call.1} parent=11 // pred_check
          %p204 = pneg %p79
        $region14: #{tpu_custom_call.1} parent=11 // pred_check_branch
          %206 = sbr.rel (%p204) target = $region16
        $region15: #{tpu_custom_call.1} parent=11 // pred_region
          %s208 = ssub.s32 4096, 4096
          %209 = vsyncadd [#allocation8], %s208
          %s210 = sshll.u32 [#allocation7], 4
          %s211 = int_to_ptr.vmem [resolvable:$true] %s210
          %216 = dma.hbm_to_vmem [thread:$0]  %s1, 4096, %s211, [#allocation8], 128, 128, 8
        $region16: #{tpu_custom_call.1} parent=11 // pred_fallthru
          _
        // Predicated region
        $region17: #{tpu_custom_call.1} parent=11 // pred_check
          %p217 = pneg %p100
        $region18: #{tpu_custom_call.1} parent=11 // pred_check_branch
          %219 = sbr.rel (%p217) target = $region20
        $region19: #{tpu_custom_call.1} parent=11 // pred_region
          %s221 = ssub.s32 2048, 2048
          %222 = vsyncadd [#allocation8], %s221
          %s223 = sshll.u32 [#allocation9], 4
          %s224 = int_to_ptr.vmem [resolvable:$true] %s223
          %229 = dma.hbm_to_vmem [thread:$0]  %s2, 2048, %s224, [#allocation8], 128, 128, 8
        $region20: #{tpu_custom_call.1} parent=11 // pred_fallthru
          _
        // Predicated region
        $region21: #{tpu_custom_call.1} parent=11 // pred_check
          %p230 = pneg %p121
        $region22: #{tpu_custom_call.1} parent=11 // pred_check_branch
          %232 = sbr.rel (%p230) target = $region24
        $region23: #{tpu_custom_call.1} parent=11 // pred_region
          _
        $region24: #{tpu_custom_call.1} parent=11 // pred_fallthru
          _
        // Predicated region
        $region25: #{tpu_custom_call.1} parent=11 // pred_check
          %p233 = pneg %p142
        $region26: #{tpu_custom_call.1} parent=11 // pred_check_branch
          %235 = sbr.rel (%p233) target = $region28
        $region27: #{tpu_custom_call.1} parent=11 // pred_region
          %s237 = ssub.s32 2048, 2048
          %238 = vsyncadd [#allocation11], %s237
          %s239 = sshll.u32 [#allocation10], 4
          %s240 = int_to_ptr.vmem [resolvable:$true] %s239
          %245 = dma.hbm_to_vmem [thread:$0]  %s4, 2048, %s240, [#allocation11], 128, 128, 8
        $region28: #{tpu_custom_call.1} parent=11 // pred_fallthru
          _
        // Predicated region
        $region29: #{tpu_custom_call.1} parent=11 // pred_check
          %p246 = pneg %p163
        $region30: #{tpu_custom_call.1} parent=11 // pred_check_branch
          %248 = sbr.rel (%p246) target = $region32
        $region31: #{tpu_custom_call.1} parent=11 // pred_region
          _
        $region32: #{tpu_custom_call.1} parent=11 // pred_fallthru
          _
      $region12: #{tpu_custom_call.1} parent=5 // pred_fallthru
        _
      %p249 = scmp.lt.s32.totalorder %s18, 2
      // Predicated region
      $region33: #{tpu_custom_call.1} parent=5 // pred_check
        %p250 = pneg %p249
      $region34: #{tpu_custom_call.1} parent=5 // pred_check_branch
        %252 = sbr.rel (%p250) target = $region36
      $region35: #{tpu_custom_call.1} parent=5 // pred_region
        // Predicated region
        $region37: #{tpu_custom_call.1} parent=35 // pred_check
          %p253 = pneg %p52
        $region38: #{tpu_custom_call.1} parent=35 // pred_check_branch
          %255 = sbr.rel (%p253) target = $region40
        $region39: #{tpu_custom_call.1} parent=35 // pred_region
          %s256 = sand.u32 %s42, 1
          %s257 = scalar_lea.sflag [#allocation5], %s256
          %s258 = sand.u32 %s42, 1
          %s259 = smul.addr %s258, 64
          %s260 = scalar_lea.vmem [#allocation4], %s259
          %s261 = smul.u32 4, %s26
          %s263 = ssub.s32 1024, 1024
          %264 = vsyncadd %s257, %s263
          %s265 = smul.addr %s25, 2
          %s266 = smul.addr %s261, 2
          %s267 = sadd.s32 %s265, %s266
          %s268 = smul.addr %s267, 128
          %s269 = scalar_lea.hbm %s0, %s268
          %s270 = sshll.u32 %s260, 4
          %s271 = int_to_ptr.vmem [resolvable:$true] %s270
          %276 = dma.hbm_to_vmem [thread:$0]  %s269, 1024, %s271, %s257, 256, 256, 16
        $region40: #{tpu_custom_call.1} parent=35 // pred_fallthru
          _
      $region36: #{tpu_custom_call.1} parent=5 // pred_fallthru
        _
      %p277 = scmp.le.s32.totalorder 1, %s18
      %p278 = scmp.lt.s32.totalorder %s18, 3
      %p279 = pnand %p277, %p278
      %p280 = pneg %p279
      // Predicated region
      $region41: #{tpu_custom_call.1} parent=5 // pred_check
        _
      $region42: #{tpu_custom_call.1} parent=5 // pred_check_branch
        %282 = sbr.rel (%p279) target = $region44
      $region43: #{tpu_custom_call.1} parent=5 // pred_region
        %s283 = ssub.s32 %s18, 1
        %s284 = sand.u32 %s45, 1
        %s285 = scalar_lea.sflag [#allocation5], %s284
        %s286 = sand.u32 %s45, 1
        %s287 = smul.addr %s286, 64
        %s288 = scalar_lea.vmem [#allocation4], %s287
        // Predicated region
        $region45: #{tpu_custom_call.1} parent=43 // pred_check
          %p289 = pneg %p58
        $region46: #{tpu_custom_call.1} parent=43 // pred_check_branch
          %291 = sbr.rel (%p289) target = $region48
        $region47: #{tpu_custom_call.1} parent=43 // pred_region
          %292 = dma.done %s285, 1024
        $region48: #{tpu_custom_call.1} parent=43 // pred_fallthru
          _
        // Predicated region
        $region49: #{tpu_custom_call.1} parent=43 // pred_check
          %p293 = pneg %p79
        $region50: #{tpu_custom_call.1} parent=43 // pred_check_branch
          %295 = sbr.rel (%p293) target = $region52
        $region51: #{tpu_custom_call.1} parent=43 // pred_region
          %296 = dma.done [#allocation8], 4096
        $region52: #{tpu_custom_call.1} parent=43 // pred_fallthru
          _
        // Predicated region
        $region53: #{tpu_custom_call.1} parent=43 // pred_check
          %p297 = pneg %p100
        $region54: #{tpu_custom_call.1} parent=43 // pred_check_branch
          %299 = sbr.rel (%p297) target = $region56
        $region55: #{tpu_custom_call.1} parent=43 // pred_region
          %300 = dma.done [#allocation8], 2048
        $region56: #{tpu_custom_call.1} parent=43 // pred_fallthru
          _
        // Predicated region
        $region57: #{tpu_custom_call.1} parent=43 // pred_check
          %p301 = pneg %p142
        $region58: #{tpu_custom_call.1} parent=43 // pred_check_branch
          %303 = sbr.rel (%p301) target = $region60
        $region59: #{tpu_custom_call.1} parent=43 // pred_region
          %304 = dma.done [#allocation11], 2048
        $region60: #{tpu_custom_call.1} parent=43 // pred_fallthru
          _
        %s305 = sand.u32 %s45, 1
        %s306 = scalar_lea.sflag [#allocation5], %s305
        %s307 = sand.u32 %s45, 1
        %s308 = smul.addr %s307, 64
        %s309 = scalar_lea.vmem [#allocation4], %s308
        %p310 = pneg %p58
        %p311 = pneg %p55
        %p312 = pneg %p79
        %p313 = pneg %p76
        %p314 = pneg %p100
        %p315 = pneg %p97
        %p316 = pneg %p121
        %p317 = pneg %p118
        %p318 = pneg %p142
        %p319 = pneg %p139
        %p320 = pneg %p163
        %p321 = pneg %p160
        %p322 = pneg %p189
        %p323 = pneg %p186
        %s324 = smul.u32 4, %s28
        %p325 = scmp.eq.s32.totalorder %s28, 0
        // Predicated region
        $region61: #{tpu_custom_call.1} parent=43 // pred_check
          %p326 = pneg %p325
        $region62: #{tpu_custom_call.1} parent=43 // pred_check_branch
          %328 = sbr.rel (%p326) target = $region64
        $region63: #{tpu_custom_call.1} parent=43 // pred_region
          %329 = vst [vmem:[#allocation2] sm:$0xff] 0.0
        $region64: #{tpu_custom_call.1} parent=43 // pred_fallthru
          _
        %v330 = vld [vmem:[%s288] sm:$0xff]
        %v331 = vld [vmem:[%s288 + $0x8] sm:$0xff]
        %v332 = vld [vmem:[%s288 + $0x10] sm:$0xff]
        %v333 = vld [vmem:[%s288 + $0x18] sm:$0xff]
        %v334 = vld [vmem:[%s288 + $0x20] sm:$0xff]
        %v335 = vld [vmem:[%s288 + $0x28] sm:$0xff]
        %v336 = vld [vmem:[%s288 + $0x30] sm:$0xff]
        %v337 = vld [vmem:[%s288 + $0x38] sm:$0xff]
        %v338 = vld [vmem:[#allocation7] sm:$0xff]
        %v339 = vld [vmem:[#allocation7 + $0x8] sm:$0xff]
        %v340 = vld [vmem:[#allocation7 + $0x10] sm:$0xff]
        %v341 = vld [vmem:[#allocation7 + $0x18] sm:$0xff]
        %v342 = vld [vmem:[#allocation7 + $0x20] sm:$0xff]
        %v343 = vld [vmem:[#allocation7 + $0x28] sm:$0xff]
        %v344 = vld [vmem:[#allocation7 + $0x30] sm:$0xff]
        %v345 = vld [vmem:[#allocation7 + $0x38] sm:$0xff]
        %v346 = vld [vmem:[#allocation7 + $0x40] sm:$0xff]
        %v347 = vld [vmem:[#allocation7 + $0x48] sm:$0xff]
        %v348 = vld [vmem:[#allocation7 + $0x50] sm:$0xff]
        %v349 = vld [vmem:[#allocation7 + $0x58] sm:$0xff]
        %v350 = vld [vmem:[#allocation7 + $0x60] sm:$0xff]
        %v351 = vld [vmem:[#allocation7 + $0x68] sm:$0xff]
        %v352 = vld [vmem:[#allocation7 + $0x70] sm:$0xff]
        %v353 = vld [vmem:[#allocation7 + $0x78] sm:$0xff]
        %v354 = vld [vmem:[#allocation7 + $0x80] sm:$0xff]
        %v355 = vld [vmem:[#allocation7 + $0x88] sm:$0xff]
        %v356 = vld [vmem:[#allocation7 + $0x90] sm:$0xff]
        %v357 = vld [vmem:[#allocation7 + $0x98] sm:$0xff]
        %v358 = vld [vmem:[#allocation7 + $0xa0] sm:$0xff]
        %v359 = vld [vmem:[#allocation7 + $0xa8] sm:$0xff]
        %v360 = vld [vmem:[#allocation7 + $0xb0] sm:$0xff]
        %v361 = vld [vmem:[#allocation7 + $0xb8] sm:$0xff]
        %v362 = vld [vmem:[#allocation7 + $0xc0] sm:$0xff]
        %v363 = vld [vmem:[#allocation7 + $0xc8] sm:$0xff]
        %v364 = vld [vmem:[#allocation7 + $0xd0] sm:$0xff]
        %v365 = vld [vmem:[#allocation7 + $0xd8] sm:$0xff]
        %v366 = vld [vmem:[#allocation7 + $0xe0] sm:$0xff]
        %v367 = vld [vmem:[#allocation7 + $0xe8] sm:$0xff]
        %v368 = vld [vmem:[#allocation7 + $0xf0] sm:$0xff]
        %v369 = vld [vmem:[#allocation7 + $0xf8] sm:$0xff]
        %v370 = vld [vmem:[%s3] sm:$0x1]
        %v372 = vlaneseq
        %v373 = vshrl.u32 %v372, 7
        %v374 = vsub.s32 0, %v373
        %v375 = vrot.slane %v370, %v374
        %377 = vmatprep.subr.mxu0 0.0
        %378 = vmatpush1.msra.mxu0 %v353
        %379 = vmatprep.subr.mxu0 0.0
        %380 = vmatpush1.msra.mxu0 %v352
        %381 = vmatprep.subr.mxu0 0.0
        %382 = vmatpush1.msra.mxu0 %v351
        %383 = vmatprep.subr.mxu0 0.0
        %384 = vmatpush1.msra.mxu0 %v350
        %385 = vmatprep.subr.mxu0 0.0
        %386 = vmatpush1.msra.mxu0 %v349
        %387 = vmatprep.subr.mxu0 0.0
        %388 = vmatpush1.msra.mxu0 %v348
        %389 = vmatprep.subr.mxu0 0.0
        %390 = vmatpush1.msra.mxu0 %v347
        %391 = vmatprep.subr.mxu0 0.0
        %392 = vmatpush1.msra.mxu0 %v346
        %393 = vmatprep.subr.mxu0 0.0
        %394 = vmatpush1.msra.mxu0 %v345
        %395 = vmatprep.subr.mxu0 0.0
        %396 = vmatpush1.msra.mxu0 %v344
        %397 = vmatprep.subr.mxu0 0.0
        %398 = vmatpush1.msra.mxu0 %v343
        %399 = vmatprep.subr.mxu0 0.0
        %400 = vmatpush1.msra.mxu0 %v342
        %401 = vmatprep.subr.mxu0 0.0
        %402 = vmatpush1.msra.mxu0 %v341
        %403 = vmatprep.subr.mxu0 0.0
        %404 = vmatpush1.msra.mxu0 %v340
        %405 = vmatprep.subr.mxu0 0.0
        %406 = vmatpush1.msra.mxu0 %v339
        %407 = vmatprep.subr.mxu0 0.0
        %408 = vmatpush1.msra.mxu0 %v338
        %409 = vmatprep.subr.mxu0 0.0
        %410 = vmatpush2.msra.mxu0 %v369
        %411 = vmatprep.subr.mxu0 0.0
        %412 = vmatpush2.msra.mxu0 %v368
        %413 = vmatprep.subr.mxu0 0.0
        %414 = vmatpush2.msra.mxu0 %v367
        %415 = vmatprep.subr.mxu0 0.0
        %416 = vmatpush2.msra.mxu0 %v366
        %417 = vmatprep.subr.mxu0 0.0
        %418 = vmatpush2.msra.mxu0 %v365
        %419 = vmatprep.subr.mxu0 0.0
        %420 = vmatpush2.msra.mxu0 %v364
        %421 = vmatprep.subr.mxu0 0.0
        %422 = vmatpush2.msra.mxu0 %v363
        %423 = vmatprep.subr.mxu0 0.0
        %424 = vmatpush2.msra.mxu0 %v362
        %425 = vmatprep.subr.mxu0 0.0
        %426 = vmatpush2.msra.mxu0 %v361
        %427 = vmatprep.subr.mxu0 0.0
        %428 = vmatpush2.msra.mxu0 %v360
        %429 = vmatprep.subr.mxu0 0.0
        %430 = vmatpush2.msra.mxu0 %v359
        %431 = vmatprep.subr.mxu0 0.0
        %432 = vmatpush2.msra.mxu0 %v358
        %433 = vmatprep.subr.mxu0 0.0
        %434 = vmatpush2.msra.mxu0 %v357
        %435 = vmatprep.subr.mxu0 0.0
        %436 = vmatpush2.msra.mxu0 %v356
        %437 = vmatprep.subr.mxu0 0.0
        %438 = vmatpush2.msra.mxu0 %v355
        %439 = vmatprep.subr.mxu0 0.0
        %440 = vmatpush2.msra.mxu0 %v354
        %441 = vmatprep.mubr.f32.mxu0 %v331
        %442 = vmatmul.mubr.f32.gmra.mxu0 %v330
        %v443 = vpop.f32.mrf.mxu0
        %v444 = vadd.f32 %v375, %v443
        %v445 = vpop.f32.mrf.mxu0
        %446 = vmatprep.mubr.f32.mxu0 %v333
        %447 = vmatmul.mubr.f32.gmra.mxu0 %v332
        %v448 = vpop.f32.mrf.mxu0
        %v449 = vadd.f32 %v375, %v448
        %v450 = vpop.f32.mrf.mxu0
        %451 = vmatprep.mubr.f32.mxu0 %v335
        %452 = vmatmul.mubr.f32.gmra.mxu0 %v334
        %v453 = vpop.f32.mrf.mxu0
        %v454 = vadd.f32 %v375, %v453
        %v455 = vpop.f32.mrf.mxu0
        %456 = vmatprep.mubr.f32.mxu0 %v337
        %457 = vmatmul.mubr.f32.gmra.mxu0 %v336
        %v458 = vpop.f32.mrf.mxu0
        %v459 = vadd.f32 %v375, %v458
        %v460 = vpop.f32.mrf.mxu0
        %461 = vdwg.mxu0
        %462 = vst [vmem:[#allocation3] sm:$0xff] %v444
        %463 = vst [vmem:[#allocation3 + $0x8] sm:$0xff] %v449
        %464 = vst [vmem:[#allocation3 + $0x10] sm:$0xff] %v454
        %465 = vst [vmem:[#allocation3 + $0x18] sm:$0xff] %v459
        %v466 = vld [vmem:[#allocation9] sm:$0xff]
        %v467 = vld [vmem:[#allocation9 + $0x8] sm:$0xff]
        %v468 = vld [vmem:[#allocation9 + $0x10] sm:$0xff]
        %v469 = vld [vmem:[#allocation9 + $0x18] sm:$0xff]
        %v470 = vld [vmem:[#allocation9 + $0x20] sm:$0xff]
        %v471 = vld [vmem:[#allocation9 + $0x28] sm:$0xff]
        %v472 = vld [vmem:[#allocation9 + $0x30] sm:$0xff]
        %v473 = vld [vmem:[#allocation9 + $0x38] sm:$0xff]
        %v474 = vld [vmem:[#allocation9 + $0x40] sm:$0xff]
        %v475 = vld [vmem:[#allocation9 + $0x48] sm:$0xff]
        %v476 = vld [vmem:[#allocation9 + $0x50] sm:$0xff]
        %v477 = vld [vmem:[#allocation9 + $0x58] sm:$0xff]
        %v478 = vld [vmem:[#allocation9 + $0x60] sm:$0xff]
        %v479 = vld [vmem:[#allocation9 + $0x68] sm:$0xff]
        %v480 = vld [vmem:[#allocation9 + $0x70] sm:$0xff]
        %v481 = vld [vmem:[#allocation9 + $0x78] sm:$0xff]
        %v482 = vld [vmem:[#allocation2] sm:$0xff]
        %v483 = vld [vmem:[#allocation3] sm:$0xff]
        %484 = vmatprep.subr.mxu0 0.0
        %485 = vmatpush1.msra.mxu0 %v481
        %486 = vmatprep.subr.mxu0 0.0
        %487 = vmatpush1.msra.mxu0 %v480
        %488 = vmatprep.subr.mxu0 0.0
        %489 = vmatpush1.msra.mxu0 %v479
        %490 = vmatprep.subr.mxu0 0.0
        %491 = vmatpush1.msra.mxu0 %v478
        %492 = vmatprep.subr.mxu0 0.0
        %493 = vmatpush1.msra.mxu0 %v477
        %494 = vmatprep.subr.mxu0 0.0
        %495 = vmatpush1.msra.mxu0 %v476
        %496 = vmatprep.subr.mxu0 0.0
        %497 = vmatpush1.msra.mxu0 %v475
        %498 = vmatprep.subr.mxu0 0.0
        %499 = vmatpush1.msra.mxu0 %v474
        %500 = vmatprep.subr.mxu0 0.0
        %501 = vmatpush1.msra.mxu0 %v473
        %502 = vmatprep.subr.mxu0 0.0
        %503 = vmatpush1.msra.mxu0 %v472
        %504 = vmatprep.subr.mxu0 0.0
        %505 = vmatpush1.msra.mxu0 %v471
        %506 = vmatprep.subr.mxu0 0.0
        %507 = vmatpush1.msra.mxu0 %v470
        %508 = vmatprep.subr.mxu0 0.0
        %509 = vmatpush1.msra.mxu0 %v469
        %510 = vmatprep.subr.mxu0 0.0
        %511 = vmatpush1.msra.mxu0 %v468
        %512 = vmatprep.subr.mxu0 0.0
        %513 = vmatpush1.msra.mxu0 %v467
        %514 = vmatprep.subr.mxu0 0.0
        %515 = vmatpush1.msra.mxu0 %v466
        %516 = vmatprep.subr.mxu0 0.0
        %517 = vmatpush2.msra.mxu0 0.0
        %518 = vmatprep.subr.mxu0 0.0
        %519 = vmatpush2.msra.mxu0 0.0
        %520 = vmatprep.subr.mxu0 0.0
        %521 = vmatpush2.msra.mxu0 0.0
        %522 = vmatprep.subr.mxu0 0.0
        %523 = vmatpush2.msra.mxu0 0.0
        %524 = vmatprep.subr.mxu0 0.0
        %525 = vmatpush2.msra.mxu0 0.0
        %526 = vmatprep.subr.mxu0 0.0
        %527 = vmatpush2.msra.mxu0 0.0
        %528 = vmatprep.subr.mxu0 0.0
        %529 = vmatpush2.msra.mxu0 0.0
        %530 = vmatprep.subr.mxu0 0.0
        %531 = vmatpush2.msra.mxu0 0.0
        %532 = vmatprep.subr.mxu0 0.0
        %533 = vmatpush2.msra.mxu0 0.0
        %534 = vmatprep.subr.mxu0 0.0
        %535 = vmatpush2.msra.mxu0 0.0
        %536 = vmatprep.subr.mxu0 0.0
        %537 = vmatpush2.msra.mxu0 0.0
        %538 = vmatprep.subr.mxu0 0.0
        %539 = vmatpush2.msra.mxu0 0.0
        %540 = vmatprep.subr.mxu0 0.0
        %541 = vmatpush2.msra.mxu0 0.0
        %542 = vmatprep.subr.mxu0 0.0
        %543 = vmatpush2.msra.mxu0 0.0
        %544 = vmatprep.subr.mxu0 0.0
        %545 = vmatpush2.msra.mxu0 0.0
        %546 = vmatprep.subr.mxu0 0.0
        %547 = vmatpush2.msra.mxu0 0.0
        %548 = vmatprep.mubr.f32.mxu0 0.0
        %549 = vmatmul.mubr.f32.gmra.mxu0 %v482
        %v550 = vpop.f32.mrf.mxu0
        %v551 = vadd.f32 0.0, %v550
        %v552 = vpop.f32.mrf.mxu0
        %553 = vdwg.mxu0
        %v554 = vadd.f32 %v483, %v551
        %v555 = vtanh.pop %v554
        %s556 = scalar_lea.vmem [#allocation3], 8
        %v557 = vld [vmem:[%s556] sm:$0xff]
        %558 = vmatprep.subr.mxu0 0.0
        %559 = vmatpush1.msra.mxu0 %v481
        %560 = vmatprep.subr.mxu0 0.0
        %561 = vmatpush1.msra.mxu0 %v480
        %562 = vmatprep.subr.mxu0 0.0
        %563 = vmatpush1.msra.mxu0 %v479
        %564 = vmatprep.subr.mxu0 0.0
        %565 = vmatpush1.msra.mxu0 %v478
        %566 = vmatprep.subr.mxu0 0.0
        %567 = vmatpush1.msra.mxu0 %v477
        %568 = vmatprep.subr.mxu0 0.0
        %569 = vmatpush1.msra.mxu0 %v476
        %570 = vmatprep.subr.mxu0 0.0
        %571 = vmatpush1.msra.mxu0 %v475
        %572 = vmatprep.subr.mxu0 0.0
        %573 = vmatpush1.msra.mxu0 %v474
        %574 = vmatprep.subr.mxu0 0.0
        %575 = vmatpush1.msra.mxu0 %v473
        %576 = vmatprep.subr.mxu0 0.0
        %577 = vmatpush1.msra.mxu0 %v472
        %578 = vmatprep.subr.mxu0 0.0
        %579 = vmatpush1.msra.mxu0 %v471
        %580 = vmatprep.subr.mxu0 0.0
        %581 = vmatpush1.msra.mxu0 %v470
        %582 = vmatprep.subr.mxu0 0.0
        %583 = vmatpush1.msra.mxu0 %v469
        %584 = vmatprep.subr.mxu0 0.0
        %585 = vmatpush1.msra.mxu0 %v468
        %586 = vmatprep.subr.mxu0 0.0
        %587 = vmatpush1.msra.mxu0 %v467
        %588 = vmatprep.subr.mxu0 0.0
        %589 = vmatpush1.msra.mxu0 %v466
        %590 = vmatprep.subr.mxu0 0.0
        %591 = vmatpush2.msra.mxu0 0.0
        %592 = vmatprep.subr.mxu0 0.0
        %593 = vmatpush2.msra.mxu0 0.0
        %594 = vmatprep.subr.mxu0 0.0
        %595 = vmatpush2.msra.mxu0 0.0
        %596 = vmatprep.subr.mxu0 0.0
        %597 = vmatpush2.msra.mxu0 0.0
        %598 = vmatprep.subr.mxu0 0.0
        %599 = vmatpush2.msra.mxu0 0.0
        %600 = vmatprep.subr.mxu0 0.0
        %601 = vmatpush2.msra.mxu0 0.0
        %602 = vmatprep.subr.mxu0 0.0
        %603 = vmatpush2.msra.mxu0 0.0
        %604 = vmatprep.subr.mxu0 0.0
        %605 = vmatpush2.msra.mxu0 0.0
        %606 = vmatprep.subr.mxu0 0.0
        %607 = vmatpush2.msra.mxu0 0.0
        %608 = vmatprep.subr.mxu0 0.0
        %609 = vmatpush2.msra.mxu0 0.0
        %610 = vmatprep.subr.mxu0 0.0
        %611 = vmatpush2.msra.mxu0 0.0
        %612 = vmatprep.subr.mxu0 0.0
        %613 = vmatpush2.msra.mxu0 0.0
        %614 = vmatprep.subr.mxu0 0.0
        %615 = vmatpush2.msra.mxu0 0.0
        %616 = vmatprep.subr.mxu0 0.0
        %617 = vmatpush2.msra.mxu0 0.0
        %618 = vmatprep.subr.mxu0 0.0
        %619 = vmatpush2.msra.mxu0 0.0
        %620 = vmatprep.subr.mxu0 0.0
        %621 = vmatpush2.msra.mxu0 0.0
        %622 = vmatprep.mubr.f32.mxu0 0.0
        %623 = vmatmul.mubr.f32.gmra.mxu0 %v555
        %v624 = vpop.f32.mrf.mxu0
        %v625 = vadd.f32 0.0, %v624
        %v626 = vpop.f32.mrf.mxu0
        %627 = vdwg.mxu0
        %v628 = vadd.f32 %v557, %v625
        %v629 = vtanh.pop %v628
        %s630 = scalar_lea.vmem [#allocation3], 16
        %v631 = vld [vmem:[%s630] sm:$0xff]
        %632 = vmatprep.subr.mxu0 0.0
        %633 = vmatpush1.msra.mxu0 %v481
        %634 = vmatprep.subr.mxu0 0.0
        %635 = vmatpush1.msra.mxu0 %v480
        %636 = vmatprep.subr.mxu0 0.0
        %637 = vmatpush1.msra.mxu0 %v479
        %638 = vmatprep.subr.mxu0 0.0
        %639 = vmatpush1.msra.mxu0 %v478
        %640 = vmatprep.subr.mxu0 0.0
        %641 = vmatpush1.msra.mxu0 %v477
        %642 = vmatprep.subr.mxu0 0.0
        %643 = vmatpush1.msra.mxu0 %v476
        %644 = vmatprep.subr.mxu0 0.0
        %645 = vmatpush1.msra.mxu0 %v475
        %646 = vmatprep.subr.mxu0 0.0
        %647 = vmatpush1.msra.mxu0 %v474
        %648 = vmatprep.subr.mxu0 0.0
        %649 = vmatpush1.msra.mxu0 %v473
        %650 = vmatprep.subr.mxu0 0.0
        %651 = vmatpush1.msra.mxu0 %v472
        %652 = vmatprep.subr.mxu0 0.0
        %653 = vmatpush1.msra.mxu0 %v471
        %654 = vmatprep.subr.mxu0 0.0
        %655 = vmatpush1.msra.mxu0 %v470
        %656 = vmatprep.subr.mxu0 0.0
        %657 = vmatpush1.msra.mxu0 %v469
        %658 = vmatprep.subr.mxu0 0.0
        %659 = vmatpush1.msra.mxu0 %v468
        %660 = vmatprep.subr.mxu0 0.0
        %661 = vmatpush1.msra.mxu0 %v467
        %662 = vmatprep.subr.mxu0 0.0
        %663 = vmatpush1.msra.mxu0 %v466
        %664 = vmatprep.subr.mxu0 0.0
        %665 = vmatpush2.msra.mxu0 0.0
        %666 = vmatprep.subr.mxu0 0.0
        %667 = vmatpush2.msra.mxu0 0.0
        %668 = vmatprep.subr.mxu0 0.0
        %669 = vmatpush2.msra.mxu0 0.0
        %670 = vmatprep.subr.mxu0 0.0
        %671 = vmatpush2.msra.mxu0 0.0
        %672 = vmatprep.subr.mxu0 0.0
        %673 = vmatpush2.msra.mxu0 0.0
        %674 = vmatprep.subr.mxu0 0.0
        %675 = vmatpush2.msra.mxu0 0.0
        %676 = vmatprep.subr.mxu0 0.0
        %677 = vmatpush2.msra.mxu0 0.0
        %678 = vmatprep.subr.mxu0 0.0
        %679 = vmatpush2.msra.mxu0 0.0
        %680 = vmatprep.subr.mxu0 0.0
        %681 = vmatpush2.msra.mxu0 0.0
        %682 = vmatprep.subr.mxu0 0.0
        %683 = vmatpush2.msra.mxu0 0.0
        %684 = vmatprep.subr.mxu0 0.0
        %685 = vmatpush2.msra.mxu0 0.0
        %686 = vmatprep.subr.mxu0 0.0
        %687 = vmatpush2.msra.mxu0 0.0
        %688 = vmatprep.subr.mxu0 0.0
        %689 = vmatpush2.msra.mxu0 0.0
        %690 = vmatprep.subr.mxu0 0.0
        %691 = vmatpush2.msra.mxu0 0.0
        %692 = vmatprep.subr.mxu0 0.0
        %693 = vmatpush2.msra.mxu0 0.0
        %694 = vmatprep.subr.mxu0 0.0
        %695 = vmatpush2.msra.mxu0 0.0
        %696 = vmatprep.mubr.f32.mxu0 0.0
        %697 = vmatmul.mubr.f32.gmra.mxu0 %v629
        %v698 = vpop.f32.mrf.mxu0
        %v699 = vadd.f32 0.0, %v698
        %v700 = vpop.f32.mrf.mxu0
        %701 = vdwg.mxu0
        %v702 = vadd.f32 %v631, %v699
        %v703 = vtanh.pop %v702
        %s704 = scalar_lea.vmem [#allocation3], 24
        %v705 = vld [vmem:[%s704] sm:$0xff]
        %706 = vmatprep.subr.mxu0 0.0
        %707 = vmatpush1.msra.mxu0 %v481
        %708 = vmatprep.subr.mxu0 0.0
        %709 = vmatpush1.msra.mxu0 %v480
        %710 = vmatprep.subr.mxu0 0.0
        %711 = vmatpush1.msra.mxu0 %v479
        %712 = vmatprep.subr.mxu0 0.0
        %713 = vmatpush1.msra.mxu0 %v478
        %714 = vmatprep.subr.mxu0 0.0
        %715 = vmatpush1.msra.mxu0 %v477
        %716 = vmatprep.subr.mxu0 0.0
        %717 = vmatpush1.msra.mxu0 %v476
        %718 = vmatprep.subr.mxu0 0.0
        %719 = vmatpush1.msra.mxu0 %v475
        %720 = vmatprep.subr.mxu0 0.0
        %721 = vmatpush1.msra.mxu0 %v474
        %722 = vmatprep.subr.mxu0 0.0
        %723 = vmatpush1.msra.mxu0 %v473
        %724 = vmatprep.subr.mxu0 0.0
        %725 = vmatpush1.msra.mxu0 %v472
        %726 = vmatprep.subr.mxu0 0.0
        %727 = vmatpush1.msra.mxu0 %v471
        %728 = vmatprep.subr.mxu0 0.0
        %729 = vmatpush1.msra.mxu0 %v470
        %730 = vmatprep.subr.mxu0 0.0
        %731 = vmatpush1.msra.mxu0 %v469
        %732 = vmatprep.subr.mxu0 0.0
        %733 = vmatpush1.msra.mxu0 %v468
        %734 = vmatprep.subr.mxu0 0.0
        %735 = vmatpush1.msra.mxu0 %v467
        %736 = vmatprep.subr.mxu0 0.0
        %737 = vmatpush1.msra.mxu0 %v466
        %738 = vmatprep.subr.mxu0 0.0
        %739 = vmatpush2.msra.mxu0 0.0
        %740 = vmatprep.subr.mxu0 0.0
        %741 = vmatpush2.msra.mxu0 0.0
        %742 = vmatprep.subr.mxu0 0.0
        %743 = vmatpush2.msra.mxu0 0.0
        %744 = vmatprep.subr.mxu0 0.0
        %745 = vmatpush2.msra.mxu0 0.0
        %746 = vmatprep.subr.mxu0 0.0
        %747 = vmatpush2.msra.mxu0 0.0
        %748 = vmatprep.subr.mxu0 0.0
        %749 = vmatpush2.msra.mxu0 0.0
        %750 = vmatprep.subr.mxu0 0.0
        %751 = vmatpush2.msra.mxu0 0.0
        %752 = vmatprep.subr.mxu0 0.0
        %753 = vmatpush2.msra.mxu0 0.0
        %754 = vmatprep.subr.mxu0 0.0
        %755 = vmatpush2.msra.mxu0 0.0
        %756 = vmatprep.subr.mxu0 0.0
        %757 = vmatpush2.msra.mxu0 0.0
        %758 = vmatprep.subr.mxu0 0.0
        %759 = vmatpush2.msra.mxu0 0.0
        %760 = vmatprep.subr.mxu0 0.0
        %761 = vmatpush2.msra.mxu0 0.0
        %762 = vmatprep.subr.mxu0 0.0
        %763 = vmatpush2.msra.mxu0 0.0
        %764 = vmatprep.subr.mxu0 0.0
        %765 = vmatpush2.msra.mxu0 0.0
        %766 = vmatprep.subr.mxu0 0.0
        %767 = vmatpush2.msra.mxu0 0.0
        %768 = vmatprep.subr.mxu0 0.0
        %769 = vmatpush2.msra.mxu0 0.0
        %770 = vmatprep.mubr.f32.mxu0 0.0
        %771 = vmatmul.mubr.f32.gmra.mxu0 %v703
        %v772 = vpop.f32.mrf.mxu0
        %v773 = vadd.f32 0.0, %v772
        %v774 = vpop.f32.mrf.mxu0
        %775 = vdwg.mxu0
        %v776 = vadd.f32 %v705, %v773
        %v777 = vtanh.pop %v776
        %778 = vst [vmem:[#allocation2] sm:$0xff] %v777
        %p779 = scmp.eq.s32.totalorder %s28, 1
        // Predicated region
        $region65: #{tpu_custom_call.1} parent=43 // pred_check
          %p780 = pneg %p779
        $region66: #{tpu_custom_call.1} parent=43 // pred_check_branch
          %782 = sbr.rel (%p780) target = $region68
        $region67: #{tpu_custom_call.1} parent=43 // pred_region
          %v783 = vld [vmem:[#allocation10] sm:$0xff]
          %v784 = vld [vmem:[#allocation10 + $0x8] sm:$0xff]
          %v785 = vld [vmem:[#allocation10 + $0x10] sm:$0xff]
          %v786 = vld [vmem:[#allocation10 + $0x18] sm:$0xff]
          %v787 = vld [vmem:[#allocation10 + $0x20] sm:$0xff]
          %v788 = vld [vmem:[#allocation10 + $0x28] sm:$0xff]
          %v789 = vld [vmem:[#allocation10 + $0x30] sm:$0xff]
          %v790 = vld [vmem:[#allocation10 + $0x38] sm:$0xff]
          %v791 = vld [vmem:[#allocation10 + $0x40] sm:$0xff]
          %v792 = vld [vmem:[#allocation10 + $0x48] sm:$0xff]
          %v793 = vld [vmem:[#allocation10 + $0x50] sm:$0xff]
          %v794 = vld [vmem:[#allocation10 + $0x58] sm:$0xff]
          %v795 = vld [vmem:[#allocation10 + $0x60] sm:$0xff]
          %v796 = vld [vmem:[#allocation10 + $0x68] sm:$0xff]
          %v797 = vld [vmem:[#allocation10 + $0x70] sm:$0xff]
          %v798 = vld [vmem:[#allocation10 + $0x78] sm:$0xff]
          %v799 = vld [vmem:[%s5] sm:$0x1]
          %v801 = vlaneseq
          %v802 = vshrl.u32 %v801, 7
          %v803 = vsub.s32 0, %v802
          %v804 = vrot.slane %v799, %v803
          %806 = vmatprep.subr.mxu0 0.0
          %807 = vmatpush1.msra.mxu0 %v798
          %808 = vmatprep.subr.mxu0 0.0
          %809 = vmatpush1.msra.mxu0 %v797
          %810 = vmatprep.subr.mxu0 0.0
          %811 = vmatpush1.msra.mxu0 %v796
          %812 = vmatprep.subr.mxu0 0.0
          %813 = vmatpush1.msra.mxu0 %v795
          %814 = vmatprep.subr.mxu0 0.0
          %815 = vmatpush1.msra.mxu0 %v794
          %816 = vmatprep.subr.mxu0 0.0
          %817 = vmatpush1.msra.mxu0 %v793
          %818 = vmatprep.subr.mxu0 0.0
          %819 = vmatpush1.msra.mxu0 %v792
          %820 = vmatprep.subr.mxu0 0.0
          %821 = vmatpush1.msra.mxu0 %v791
          %822 = vmatprep.subr.mxu0 0.0
          %823 = vmatpush1.msra.mxu0 %v790
          %824 = vmatprep.subr.mxu0 0.0
          %825 = vmatpush1.msra.mxu0 %v789
          %826 = vmatprep.subr.mxu0 0.0
          %827 = vmatpush1.msra.mxu0 %v788
          %828 = vmatprep.subr.mxu0 0.0
          %829 = vmatpush1.msra.mxu0 %v787
          %830 = vmatprep.subr.mxu0 0.0
          %831 = vmatpush1.msra.mxu0 %v786
          %832 = vmatprep.subr.mxu0 0.0
          %833 = vmatpush1.msra.mxu0 %v785
          %834 = vmatprep.subr.mxu0 0.0
          %835 = vmatpush1.msra.mxu0 %v784
          %836 = vmatprep.subr.mxu0 0.0
          %837 = vmatpush1.msra.mxu0 %v783
          %838 = vmatprep.subr.mxu0 0.0
          %839 = vmatpush2.msra.mxu0 0.0
          %840 = vmatprep.subr.mxu0 0.0
          %841 = vmatpush2.msra.mxu0 0.0
          %842 = vmatprep.subr.mxu0 0.0
          %843 = vmatpush2.msra.mxu0 0.0
          %844 = vmatprep.subr.mxu0 0.0
          %845 = vmatpush2.msra.mxu0 0.0
          %846 = vmatprep.subr.mxu0 0.0
          %847 = vmatpush2.msra.mxu0 0.0
          %848 = vmatprep.subr.mxu0 0.0
          %849 = vmatpush2.msra.mxu0 0.0
          %850 = vmatprep.subr.mxu0 0.0
          %851 = vmatpush2.msra.mxu0 0.0
          %852 = vmatprep.subr.mxu0 0.0
          %853 = vmatpush2.msra.mxu0 0.0
          %854 = vmatprep.subr.mxu0 0.0
          %855 = vmatpush2.msra.mxu0 0.0
          %856 = vmatprep.subr.mxu0 0.0
          %857 = vmatpush2.msra.mxu0 0.0
          %858 = vmatprep.subr.mxu0 0.0
          %859 = vmatpush2.msra.mxu0 0.0
          %860 = vmatprep.subr.mxu0 0.0
          %861 = vmatpush2.msra.mxu0 0.0
          %862 = vmatprep.subr.mxu0 0.0
          %863 = vmatpush2.msra.mxu0 0.0
          %864 = vmatprep.subr.mxu0 0.0
          %865 = vmatpush2.msra.mxu0 0.0
          %866 = vmatprep.subr.mxu0 0.0
          %867 = vmatpush2.msra.mxu0 0.0
          %868 = vmatprep.subr.mxu0 0.0
          %869 = vmatpush2.msra.mxu0 0.0
          %870 = vmatprep.mubr.f32.mxu0 0.0
          %871 = vmatmul.mubr.f32.gmra.mxu0 %v777
          %v872 = vpop.f32.mrf.mxu0
          %v873 = vadd.f32 %v804, %v872
          %v874 = vpop.f32.mrf.mxu0
          %875 = vdwg.mxu0
          %876 = vst [vmem:[#allocation12] sm:$0xff] %v873
        $region68: #{tpu_custom_call.1} parent=43 // pred_fallthru
          _
        // Predicated region
        $region69: #{tpu_custom_call.1} parent=43 // pred_check
          %p877 = pneg %p186
        $region70: #{tpu_custom_call.1} parent=43 // pred_check_branch
          %879 = sbr.rel (%p877) target = $region72
        $region71: #{tpu_custom_call.1} parent=43 // pred_region
          %s881 = ssub.s32 128, 128
          %882 = vsyncadd [#allocation6], %s881
          %s883 = smul.addr %s27, 128
          %s884 = scalar_lea.hbm %s6, %s883
          %s886 = sshll.u32 [#allocation12], 4
          %s887 = int_to_ptr.vmem [resolvable:$true] %s886
          %889 = dma.vmem_to_hbm [thread:$0]  %s887, 128, %s884, [#allocation6]
        $region72: #{tpu_custom_call.1} parent=43 // pred_fallthru
          _
        // Predicated region
        $region73: #{tpu_custom_call.1} parent=43 // pred_check
          %p890 = pneg %p186
        $region74: #{tpu_custom_call.1} parent=43 // pred_check_branch
          %892 = sbr.rel (%p890) target = $region76
        $region75: #{tpu_custom_call.1} parent=43 // pred_region
          %893 = dma.done [#allocation6], 128
        $region76: #{tpu_custom_call.1} parent=43 // pred_fallthru
          _
      $region44: #{tpu_custom_call.1} parent=5 // pred_fallthru
        _
      %p894 = scmp.le.s32.totalorder 2, %s18
      // Predicated region
      $region77: #{tpu_custom_call.1} parent=5 // pred_check
        %p895 = pneg %p894
      $region78: #{tpu_custom_call.1} parent=5 // pred_check_branch
        %897 = sbr.rel (%p895) target = $region80
      $region79: #{tpu_custom_call.1} parent=5 // pred_region
        %s898 = ssub.s32 %s18, 2
      $region80: #{tpu_custom_call.1} parent=5 // pred_fallthru
        _
    $region6: #{tpu_custom_call.1} parent=1 // loop_footer
      %s22 = sadd.s32 1, %s18
    $region7: #{tpu_custom_call.1} parent=1 // loop_footer_branch
      %17 = sbr.rel target = $region3
    $region8: #{tpu_custom_call.1} parent=1 // loop_exit
      _
    %899 = vsyncpa [#allocation5], 1
    %s900 = scalar_lea.sflag [#allocation5], 1
    %901 = vsyncpa %s900, 1
    %902 = vsyncpa [#allocation8], 1
    %903 = vsyncpa [#allocation11], 1
    %904 = vsyncpa [#allocation6], 1
    %s905 = scalar_lea.sflag [#allocation6], 1
    %906 = vsyncpa %s905, 1

</llo_original>
